<compile_context>
chip_gen: v7x
topology: tpu7x:2x2x1
jax: 0.10.0
libtpu: 0.0.40
codegen_flags: <defaults>
</compile_context>

<pallas_src>
import jax
import jax.numpy as jnp
from jax import lax
from jax.experimental import pallas as pl
from jax.experimental.pallas import tpu as pltpu


def _round_up(x, m):
    return ((x + m - 1) // m) * m


def _make_mlp_kernel(num_linear):
    """Kernel args: x_ref, (w_ref, b_ref) * num_linear, o_ref.

    Hidden layers: h = relu(h @ W + b), bf16 x bf16 -> f32 accumulation.
    Last layer is computed transposed (weight passed as [out_dim, hidden]) so the
    output tile is [out_dim, TILE_M] -> lane-dense, unmasked stores.
    """

    def kernel(*refs):
        x_ref = refs[0]
        o_ref = refs[-1]
        wb = refs[1:-1]

        h = x_ref[...]  # bf16 [TILE_M, in_dim]
        for li in range(num_linear - 1):
            w = wb[2 * li][...]        # bf16 [in, out]
            b = wb[2 * li + 1][...]    # f32  [1, out]
            acc = jnp.dot(h, w, preferred_element_type=jnp.float32) + b
            acc = jnp.maximum(acc, 0.0)          # ReLU in f32 (VPU, no bf16 needed)
            h = acc.astype(jnp.bfloat16)         # bf16 feed for the next MXU pass

        w_t = wb[2 * (num_linear - 1)][...]      # bf16 [out_dim, hidden]
        b_t = wb[2 * (num_linear - 1) + 1][...]  # f32  [out_dim, 1]
        # out^T = W_last^T @ h^T  (dot_general contracting both last dims == trans_b).
        out_t = lax.dot_general(
            w_t, h, (((1,), (1,)), ((), ())), preferred_element_type=jnp.float32
        ) + b_t                                   # f32 [out_dim, TILE_M]
        o_ref[...] = out_t.astype(o_ref.dtype)

    return kernel


def mlp_forward(x, weights, biases, *, tile_m=None):
    """MLP forward pass in a single batch-tiled Pallas kernel.

    x:        [batch, input_length] float32
    weights:  list of [in, out] float32 (transposed vs PyTorch's [out, in])
    biases:   list of [1, out] float32
    """
    num_linear = len(weights)
    batch, in_dim = x.shape
    out_dim = weights[-1].shape[1]

    # Lane-dense output needs TILE_M % 128 == 0; cap at 512 for vreg pressure of the
    # unrolled activation chain.
    if tile_m is None:
        tile_m = min(512, _round_up(max(batch, 128), 128))
    assert tile_m % 128 == 0
    padded_batch = _round_up(batch, tile_m)
    num_tiles = padded_batch // tile_m

    # Zero-pad batch so every grid step sees a full tile; padded rows sliced off below.
    if padded_batch != batch:
        x = jnp.pad(x, ((0, padded_batch - batch), (0, 0)))
    x_bf16 = x.astype(jnp.bfloat16)

    # Params: hidden-layer weights stay [in, out] bf16; the last layer is passed
    # transposed ([out_dim, hidden]) with bias [out_dim, 1] for the lane-dense store.
    flat_params = []
    in_specs = [pl.BlockSpec((tile_m, in_dim), lambda i: (i, 0))]
    for li, (w, b) in enumerate(zip(weights, biases)):
        if li == num_linear - 1:
            w_arr = jnp.transpose(w).astype(jnp.bfloat16)           # [out_dim, hidden]
            b_arr = jnp.reshape(b, (out_dim, 1)).astype(jnp.float32)
        else:
            w_arr = w.astype(jnp.bfloat16)                          # [in, out]
            b_arr = b.astype(jnp.float32)                           # [1, out]
        flat_params.append(w_arr)
        flat_params.append(b_arr)
        # Constant index_map -> params DMA'd once, resident across the batch grid.
        in_specs.append(pl.BlockSpec(w_arr.shape, lambda i: (0, 0)))
        in_specs.append(pl.BlockSpec(b_arr.shape, lambda i: (0, 0)))

    out_specs = pl.BlockSpec((out_dim, tile_m), lambda i: (0, i))
    out_shape = jax.ShapeDtypeStruct((out_dim, padded_batch), jnp.float32)

    # Advisory cost estimate for XLA scheduling around the custom call.
    dims = [in_dim] + [w.shape[1] for w in weights]
    flops = 2 * padded_batch * sum(a * b for a, b in zip(dims[:-1], dims[1:]))
    param_bytes = sum(int(p.size) * p.dtype.itemsize for p in flat_params)
    bytes_accessed = (
        int(x_bf16.size) * x_bf16.dtype.itemsize
        + out_dim * padded_batch * 4
        + param_bytes
    )
    cost = pl.CostEstimate(flops=flops, transcendentals=0, bytes_accessed=bytes_accessed)

    out_t = pl.pallas_call(
        _make_mlp_kernel(num_linear),
        grid=(num_tiles,),
        in_specs=in_specs,
        out_specs=out_specs,
        out_shape=out_shape,
        compiler_params=pltpu.CompilerParams(
            dimension_semantics=("parallel",),   # megacore sharding on v7x; no-op on v5e/v6e
            vmem_limit_bytes=32 * 1024 * 1024,   # budgeted against v7x's 64 MiB VMEM
        ),
        cost_estimate=cost,
    )(x_bf16, *flat_params)

    return jnp.transpose(out_t)[:batch]          # back to [batch, out_dim]


def init_params(key, num_filter=64, num_layers=5, input_length=10, output_length=1):
    """Deterministic init mimicking nn.Linear's uniform(-1/sqrt(fan_in), 1/sqrt(fan_in)).

    Weights returned as [in, out] (transposed vs PyTorch), biases as [1, out].
    """
    dims = [input_length] + [num_filter] * (num_layers - 1) + [output_length]
    weights, biases = [], []
    for i in range(len(dims) - 1):
        fan_in, fan_out = dims[i], dims[i + 1]
        key, kw, kb = jax.random.split(key, 3)
        bound = 1.0 / jnp.sqrt(jnp.float32(fan_in))
        w = jax.random.uniform(kw, (fan_in, fan_out), jnp.float32, -bound, bound)
        b = jax.random.uniform(kb, (1, fan_out), jnp.float32, -bound, bound)
        weights.append(w)
        biases.append(b)
    return weights, biases


def reference_forward(x, weights, biases, *, quantize_bf16=False):
    """Plain-JAX reference matching the PyTorch forward semantics.

    With quantize_bf16=True it mirrors the kernel's bf16 weight/activation rounding
    (f32 accumulation), isolating kernel bugs from quantization error.
    """
    def q(a):
        return a.astype(jnp.bfloat16).astype(jnp.float32) if quantize_bf16 else a

    h = q(x)
    n = len(weights)
    for i, (w, b) in enumerate(zip(weights, biases)):
        y = h @ q(w) + b
        if i != n - 1:
            h = q(jnp.maximum(y, 0.0))
        else:
            h = y
    return h


if __name__ == "__main__":
    # Module defaults: num_filter=64, num_layers=5, input_length=10, output_length=1
    num_filter = 64
    num_layers = 5
    input_length = 10
    output_length = 1
    batch = 8

    key = jax.random.PRNGKey(0)
    key, kx = jax.random.split(key)
    x = jax.random.normal(kx, (batch, input_length), jnp.float32)

    weights, biases = init_params(
        key,
        num_filter=num_filter,
        num_layers=num_layers,
        input_length=input_length,
        output_length=output_length,
    )

    out = jax.block_until_ready(mlp_forward(x, weights, biases))
    assert out.shape == (batch, output_length), out.shape

    ref_q = reference_forward(x, weights, biases, quantize_bf16=True)
    assert jnp.allclose(out, ref_q, atol=1e-4, rtol=1e-4), (out, ref_q)
    ref_f32 = reference_forward(x, weights, biases, quantize_bf16=False)
    assert jnp.allclose(out, ref_f32, atol=5e-2, rtol=5e-2), (out, ref_f32)

    # Exercise the multi-tile grid + batch-padding path.
    key, kx2 = jax.random.split(key)
    x2 = jax.random.normal(kx2, (300, input_length), jnp.float32)
    out2 = jax.block_until_ready(mlp_forward(x2, weights, biases, tile_m=128))
    ref2 = reference_forward(x2, weights, biases, quantize_bf16=True)
    assert out2.shape == (300, output_length), out2.shape
    assert jnp.allclose(out2, ref2, atol=1e-4, rtol=1e-4), (out2, ref2)

    print("KERNEL_OK")
</pallas_src>

<mosaic_0001>
module attributes {stable_mosaic.version = 11 : i64} {
  func.func @kernel(%arg0: i32, %arg1: memref<128x10xbf16, #tpu.memory_space<vmem>>, %arg2: memref<10x64xbf16, #tpu.memory_space<vmem>>, %arg3: memref<1x64xf32, #tpu.memory_space<vmem>>, %arg4: memref<64x64xbf16, #tpu.memory_space<vmem>>, %arg5: memref<1x64xf32, #tpu.memory_space<vmem>>, %arg6: memref<64x64xbf16, #tpu.memory_space<vmem>>, %arg7: memref<1x64xf32, #tpu.memory_space<vmem>>, %arg8: memref<64x64xbf16, #tpu.memory_space<vmem>>, %arg9: memref<1x64xf32, #tpu.memory_space<vmem>>, %arg10: memref<1x64xbf16, #tpu.memory_space<vmem>>, %arg11: memref<1x1xf32, #tpu.memory_space<vmem>>, %arg12: memref<1x128xf32, #tpu.memory_space<vmem>>) attributes {dimension_semantics = [#tpu.dimension_semantics<parallel>], iteration_bounds = array<i64: 1>, scalar_prefetch = 0 : i64, scratch_operands = 0 : i64, tpu.core_type = #tpu.core_type<tc>, window_params = [{transform_indices = @transform_0, window_bounds = array<i64: 128, 10>}, {pipeline_mode = #tpu.pipeline_mode<synchronous>, transform_indices = @transform_1, window_bounds = array<i64: 10, 64>}, {pipeline_mode = #tpu.pipeline_mode<synchronous>, transform_indices = @transform_2, window_bounds = array<i64: 1, 64>}, {pipeline_mode = #tpu.pipeline_mode<synchronous>, transform_indices = @transform_3, window_bounds = array<i64: 64, 64>}, {pipeline_mode = #tpu.pipeline_mode<synchronous>, transform_indices = @transform_4, window_bounds = array<i64: 1, 64>}, {pipeline_mode = #tpu.pipeline_mode<synchronous>, transform_indices = @transform_5, window_bounds = array<i64: 64, 64>}, {pipeline_mode = #tpu.pipeline_mode<synchronous>, transform_indices = @transform_6, window_bounds = array<i64: 1, 64>}, {pipeline_mode = #tpu.pipeline_mode<synchronous>, transform_indices = @transform_7, window_bounds = array<i64: 64, 64>}, {pipeline_mode = #tpu.pipeline_mode<synchronous>, transform_indices = @transform_8, window_bounds = array<i64: 1, 64>}, {pipeline_mode = #tpu.pipeline_mode<synchronous>, transform_indices = @transform_9, window_bounds = array<i64: 1, 64>}, {pipeline_mode = #tpu.pipeline_mode<synchronous>, transform_indices = @transform_10, window_bounds = array<i64: 1, 1>}, {transform_indices = @transform_11, window_bounds = array<i64: 1, 128>}]} {
    %c0 = arith.constant 0 : index
    %c0_0 = arith.constant 0 : index
    %0 = vector.load %arg1[%c0, %c0_0] : memref<128x10xbf16, #tpu.memory_space<vmem>>, vector<128x10xbf16>
    %c0_1 = arith.constant 0 : index
    %c0_2 = arith.constant 0 : index
    %1 = vector.load %arg2[%c0_1, %c0_2] : memref<10x64xbf16, #tpu.memory_space<vmem>>, vector<10x64xbf16>
    %c0_3 = arith.constant 0 : index
    %c0_4 = arith.constant 0 : index
    %2 = vector.load %arg3[%c0_3, %c0_4] : memref<1x64xf32, #tpu.memory_space<vmem>>, vector<1x64xf32>
    %cst = arith.constant dense<0.000000e+00> : vector<128x64xf32>
    %3 = tpu.matmul %0, %1, %cst {dimension_numbers = #tpu.dot_dimension_numbers<[1], [0], [0], [1], [0, 0, 1, 1], [], []>} : vector<128x10xbf16>, vector<10x64xbf16>, vector<128x64xf32> -> vector<128x64xf32>
    %4 = vector.broadcast %2 : vector<1x64xf32> to vector<128x64xf32>
    %5 = arith.addf %3, %4 : vector<128x64xf32>
    %cst_5 = arith.constant 0.000000e+00 : f32
    %6 = vector.broadcast %cst_5 : f32 to vector<128x64xf32>
    %7 = arith.maximumf %5, %6 : vector<128x64xf32>
    %8 = arith.truncf %7 : vector<128x64xf32> to vector<128x64xbf16>
    %c0_6 = arith.constant 0 : index
    %c0_7 = arith.constant 0 : index
    %9 = vector.load %arg4[%c0_6, %c0_7] : memref<64x64xbf16, #tpu.memory_space<vmem>>, vector<64x64xbf16>
    %c0_8 = arith.constant 0 : index
    %c0_9 = arith.constant 0 : index
    %10 = vector.load %arg5[%c0_8, %c0_9] : memref<1x64xf32, #tpu.memory_space<vmem>>, vector<1x64xf32>
    %cst_10 = arith.constant dense<0.000000e+00> : vector<128x64xf32>
    %11 = tpu.matmul %8, %9, %cst_10 {dimension_numbers = #tpu.dot_dimension_numbers<[1], [0], [0], [1], [0, 0, 1, 1], [], []>} : vector<128x64xbf16>, vector<64x64xbf16>, vector<128x64xf32> -> vector<128x64xf32>
    %12 = vector.broadcast %10 : vector<1x64xf32> to vector<128x64xf32>
    %13 = arith.addf %11, %12 : vector<128x64xf32>
    %cst_11 = arith.constant 0.000000e+00 : f32
    %14 = vector.broadcast %cst_11 : f32 to vector<128x64xf32>
    %15 = arith.maximumf %13, %14 : vector<128x64xf32>
    %16 = arith.truncf %15 : vector<128x64xf32> to vector<128x64xbf16>
    %c0_12 = arith.constant 0 : index
    %c0_13 = arith.constant 0 : index
    %17 = vector.load %arg6[%c0_12, %c0_13] : memref<64x64xbf16, #tpu.memory_space<vmem>>, vector<64x64xbf16>
    %c0_14 = arith.constant 0 : index
    %c0_15 = arith.constant 0 : index
    %18 = vector.load %arg7[%c0_14, %c0_15] : memref<1x64xf32, #tpu.memory_space<vmem>>, vector<1x64xf32>
    %cst_16 = arith.constant dense<0.000000e+00> : vector<128x64xf32>
    %19 = tpu.matmul %16, %17, %cst_16 {dimension_numbers = #tpu.dot_dimension_numbers<[1], [0], [0], [1], [0, 0, 1, 1], [], []>} : vector<128x64xbf16>, vector<64x64xbf16>, vector<128x64xf32> -> vector<128x64xf32>
    %20 = vector.broadcast %18 : vector<1x64xf32> to vector<128x64xf32>
    %21 = arith.addf %19, %20 : vector<128x64xf32>
    %cst_17 = arith.constant 0.000000e+00 : f32
    %22 = vector.broadcast %cst_17 : f32 to vector<128x64xf32>
    %23 = arith.maximumf %21, %22 : vector<128x64xf32>
    %24 = arith.truncf %23 : vector<128x64xf32> to vector<128x64xbf16>
    %c0_18 = arith.constant 0 : index
    %c0_19 = arith.constant 0 : index
    %25 = vector.load %arg8[%c0_18, %c0_19] : memref<64x64xbf16, #tpu.memory_space<vmem>>, vector<64x64xbf16>
    %c0_20 = arith.constant 0 : index
    %c0_21 = arith.constant 0 : index
    %26 = vector.load %arg9[%c0_20, %c0_21] : memref<1x64xf32, #tpu.memory_space<vmem>>, vector<1x64xf32>
    %cst_22 = arith.constant dense<0.000000e+00> : vector<128x64xf32>
    %27 = tpu.matmul %24, %25, %cst_22 {dimension_numbers = #tpu.dot_dimension_numbers<[1], [0], [0], [1], [0, 0, 1, 1], [], []>} : vector<128x64xbf16>, vector<64x64xbf16>, vector<128x64xf32> -> vector<128x64xf32>
    %28 = vector.broadcast %26 : vector<1x64xf32> to vector<128x64xf32>
    %29 = arith.addf %27, %28 : vector<128x64xf32>
    %cst_23 = arith.constant 0.000000e+00 : f32
    %30 = vector.broadcast %cst_23 : f32 to vector<128x64xf32>
    %31 = arith.maximumf %29, %30 : vector<128x64xf32>
    %32 = arith.truncf %31 : vector<128x64xf32> to vector<128x64xbf16>
    %c0_24 = arith.constant 0 : index
    %c0_25 = arith.constant 0 : index
    %33 = vector.load %arg10[%c0_24, %c0_25] : memref<1x64xbf16, #tpu.memory_space<vmem>>, vector<1x64xbf16>
    %c0_26 = arith.constant 0 : index
    %c0_27 = arith.constant 0 : index
    %34 = vector.load %arg11[%c0_26, %c0_27] : memref<1x1xf32, #tpu.memory_space<vmem>>, vector<1x1xf32>
    %cst_28 = arith.constant dense<0.000000e+00> : vector<1x128xf32>
    %35 = tpu.matmul %33, %32, %cst_28 {dimension_numbers = #tpu.dot_dimension_numbers<[1], [1], [0], [0], [0, 0, 1, 0], [], []>} : vector<1x64xbf16>, vector<128x64xbf16>, vector<1x128xf32> -> vector<1x128xf32>
    %36 = vector.broadcast %34 : vector<1x1xf32> to vector<1x128xf32>
    %37 = arith.addf %35, %36 : vector<1x128xf32>
    %c0_29 = arith.constant 0 : index
    %c0_30 = arith.constant 0 : index
    %38 = vector.load %arg12[%c0_29, %c0_30] : memref<1x128xf32, #tpu.memory_space<vmem>>, vector<1x128xf32>
    tpu.vector_store %arg12[%c0_29, %c0_30], %37 {strides = array<i32>} : memref<1x128xf32, #tpu.memory_space<vmem>>, vector<1x128xf32>,
    return
  }
  func.func @transform_0(%arg0: i32) -> (i32, i32) {
    %c0_i32 = arith.constant 0 : i32
    %c0_i32_0 = arith.constant 0 : i32
    return %arg0, %c0_i32 : i32, i32
  }
  func.func @transform_1(%arg0: i32) -> (i32, i32) {
    %c0_i32 = arith.constant 0 : i32
    %c0_i32_0 = arith.constant 0 : i32
    %c0_i32_1 = arith.constant 0 : i32
    return %c0_i32, %c0_i32_0 : i32, i32
  }
  func.func @transform_2(%arg0: i32) -> (i32, i32) {
    %c0_i32 = arith.constant 0 : i32
    %c0_i32_0 = arith.constant 0 : i32
    %c0_i32_1 = arith.constant 0 : i32
    return %c0_i32, %c0_i32_0 : i32, i32
  }
  func.func @transform_3(%arg0: i32) -> (i32, i32) {
    %c0_i32 = arith.constant 0 : i32
    %c0_i32_0 = arith.constant 0 : i32
    %c0_i32_1 = arith.constant 0 : i32
    return %c0_i32, %c0_i32_0 : i32, i32
  }
  func.func @transform_4(%arg0: i32) -> (i32, i32) {
    %c0_i32 = arith.constant 0 : i32
    %c0_i32_0 = arith.constant 0 : i32
    %c0_i32_1 = arith.constant 0 : i32
    return %c0_i32, %c0_i32_0 : i32, i32
  }
  func.func @transform_5(%arg0: i32) -> (i32, i32) {
    %c0_i32 = arith.constant 0 : i32
    %c0_i32_0 = arith.constant 0 : i32
    %c0_i32_1 = arith.constant 0 : i32
    return %c0_i32, %c0_i32_0 : i32, i32
  }
  func.func @transform_6(%arg0: i32) -> (i32, i32) {
    %c0_i32 = arith.constant 0 : i32
    %c0_i32_0 = arith.constant 0 : i32
    %c0_i32_1 = arith.constant 0 : i32
    return %c0_i32, %c0_i32_0 : i32, i32
  }
  func.func @transform_7(%arg0: i32) -> (i32, i32) {
    %c0_i32 = arith.constant 0 : i32
    %c0_i32_0 = arith.constant 0 : i32
    %c0_i32_1 = arith.constant 0 : i32
    return %c0_i32, %c0_i32_0 : i32, i32
  }
  func.func @transform_8(%arg0: i32) -> (i32, i32) {
    %c0_i32 = arith.constant 0 : i32
    %c0_i32_0 = arith.constant 0 : i32
    %c0_i32_1 = arith.constant 0 : i32
    return %c0_i32, %c0_i32_0 : i32, i32
  }
  func.func @transform_9(%arg0: i32) -> (i32, i32) {
    %c0_i32 = arith.constant 0 : i32
    %c0_i32_0 = arith.constant 0 : i32
    %c0_i32_1 = arith.constant 0 : i32
    return %c0_i32, %c0_i32_0 : i32, i32
  }
  func.func @transform_10(%arg0: i32) -> (i32, i32) {
    %c0_i32 = arith.constant 0 : i32
    %c0_i32_0 = arith.constant 0 : i32
    %c0_i32_1 = arith.constant 0 : i32
    return %c0_i32, %c0_i32_0 : i32, i32
  }
  func.func @transform_11(%arg0: i32) -> (i32, i32) {
    %c0_i32 = arith.constant 0 : i32
    %c0_i32_0 = arith.constant 0 : i32
    return %c0_i32, %arg0 : i32, i32
  }
}

</mosaic_0001>

<llo_original>
// kernel: tpu_custom_call.1
$region0: #{tpu_custom_call.1}
  #allocation0 [shape = 'u32[]', space=smem, size = 0x4, offset = 0x4, fixed_abs, tag = 'smem constant byte address 0x4 - core index']
  #allocation1 [shape = 'u32[144,128]{1,0:T(1,128)}', space=vmem, size = 0x12000, scoped, tag = 'internal scratch']
  #allocation2 [shape = 'f32[1,1]{1,0:T(1,128)S(1)}', space=vmem, size = 0x200, scoped, tag = 'scoped memory for tpu_custom_call.1']
  %s0 = inlined_call_operand.vmem [shape: bf16[128,10], index: 0, kind: input, shape index: {}]
  %s1 = inlined_call_operand.hbm [shape: bf16[10,64], index: 1, kind: input, shape index: {}]
  %s2 = inlined_call_operand.vmem [shape: f32[1,64], index: 2, kind: input, shape index: {}]
  %s3 = inlined_call_operand.vmem [shape: bf16[64,64], index: 3, kind: input, shape index: {}]
  %s4 = inlined_call_operand.vmem [shape: f32[1,64], index: 4, kind: input, shape index: {}]
  %s5 = inlined_call_operand.vmem [shape: bf16[64,64], index: 5, kind: input, shape index: {}]
  %s6 = inlined_call_operand.hbm [shape: f32[1,64], index: 6, kind: input, shape index: {}]
  %s7 = inlined_call_operand.vmem [shape: bf16[64,64], index: 7, kind: input, shape index: {}]
  %s8 = inlined_call_operand.vmem [shape: f32[1,64], index: 8, kind: input, shape index: {}]
  %s9 = inlined_call_operand.vmem [shape: bf16[1,64], index: 9, kind: input, shape index: {}]
  %s10 = inlined_call_operand.<no memory space> [shape: f32[1,1], index: 10, kind: input, shape index: {}]
  %s11 = inlined_call_operand.hbm [shape: f32[1,128], index: 11, kind: output, shape index: {}]
  %s12 = sld [smem:[#allocation0]]
  $region62: #{tpu_custom_call.1} parent=0
    _
  %s14 = ssub.s32 1, %s12
  %s15 = scalar_select 0, %s14, %s12
  %v16 = vstv %s10
  %17 = vst [vmem:[#allocation2] sm:$0x1] %v16
  $region1: #{tpu_custom_call.1} parent=0
    #allocation3 [shape = 'u8[4096]{0}', space=vmem, size = 0x1000, scoped, tag = 'input window, operand 1, single buffered']
    #allocation4 [shape = 's32[1]{0}', space=sflag, size = 0x4, scoped, tag = 'scoped memory for tpu_custom_call.1']
    #allocation5 [shape = 's32[1]{0}', space=sflag, size = 0x4, scoped, tag = 'scoped memory for tpu_custom_call.1']
    #allocation6 [shape = 'u8[512]{0}', space=vmem, size = 0x400, scoped, tag = 'input window, operand 6, single buffered']
    #allocation7 [shape = 's32[1]{0}', space=sflag, size = 0x4, scoped, tag = 'scoped memory for tpu_custom_call.1']
    #allocation8 [shape = 'u8[512]{0}', space=vmem, size = 0x400, scoped, tag = 'output window, operand 0, single buffered']
    %18 = vsyncpa [#allocation4], 0
    %19 = vsyncpa [#allocation7], 0
    %20 = vsyncpa [#allocation5], 0
    // Predicated region
    $region2: #{tpu_custom_call.1} parent=1 // pred_check
      _
    $region3: #{tpu_custom_call.1} parent=1 // pred_check_branch
      %22 = sbr.rel (0) target = $region5
    $region4: #{tpu_custom_call.1} parent=1 // pred_region
      _
    $region5: #{tpu_custom_call.1} parent=1 // pred_fallthru
      _
    // Predicated region
    $region6: #{tpu_custom_call.1} parent=1 // pred_check
      _
    $region7: #{tpu_custom_call.1} parent=1 // pred_check_branch
      %24 = sbr.rel (0) target = $region9
    $region8: #{tpu_custom_call.1} parent=1 // pred_region
      %s26 = ssub.s32 128, 128
      %27 = vsyncadd [#allocation4], %s26
      %s28 = sshll.u32 [#allocation3], 4
      %s29 = int_to_ptr.vmem [resolvable:$true] %s28
      %34 = dma.hbm_to_vmem [thread:$0]  %s1, 128, %s29, [#allocation4], 64, 64, 4
    $region9: #{tpu_custom_call.1} parent=1 // pred_fallthru
      _
    // Predicated region
    $region10: #{tpu_custom_call.1} parent=1 // pred_check
      _
    $region11: #{tpu_custom_call.1} parent=1 // pred_check_branch
      %36 = sbr.rel (0) target = $region13
    $region12: #{tpu_custom_call.1} parent=1 // pred_region
      _
    $region13: #{tpu_custom_call.1} parent=1 // pred_fallthru
      _
    // Predicated region
    $region14: #{tpu_custom_call.1} parent=1 // pred_check
      _
    $region15: #{tpu_custom_call.1} parent=1 // pred_check_branch
      %38 = sbr.rel (0) target = $region17
    $region16: #{tpu_custom_call.1} parent=1 // pred_region
      _
    $region17: #{tpu_custom_call.1} parent=1 // pred_fallthru
      _
    // Predicated region
    $region18: #{tpu_custom_call.1} parent=1 // pred_check
      _
    $region19: #{tpu_custom_call.1} parent=1 // pred_check_branch
      %40 = sbr.rel (0) target = $region21
    $region20: #{tpu_custom_call.1} parent=1 // pred_region
      _
    $region21: #{tpu_custom_call.1} parent=1 // pred_fallthru
      _
    // Predicated region
    $region22: #{tpu_custom_call.1} parent=1 // pred_check
      _
    $region23: #{tpu_custom_call.1} parent=1 // pred_check_branch
      %42 = sbr.rel (0) target = $region25
    $region24: #{tpu_custom_call.1} parent=1 // pred_region
      _
    $region25: #{tpu_custom_call.1} parent=1 // pred_fallthru
      _
    // Predicated region
    $region26: #{tpu_custom_call.1} parent=1 // pred_check
      _
    $region27: #{tpu_custom_call.1} parent=1 // pred_check_branch
      %44 = sbr.rel (0) target = $region29
    $region28: #{tpu_custom_call.1} parent=1 // pred_region
      %s46 = ssub.s32 16, 16
      %47 = vsyncadd [#allocation7], %s46
      %s49 = sshll.u32 [#allocation6], 4
      %s50 = int_to_ptr.vmem [resolvable:$true] %s49
      %52 = dma.hbm_to_vmem [thread:$0]  %s6, 16, %s50, [#allocation7]
    $region29: #{tpu_custom_call.1} parent=1 // pred_fallthru
      _
    // Predicated region
    $region30: #{tpu_custom_call.1} parent=1 // pred_check
      _
    $region31: #{tpu_custom_call.1} parent=1 // pred_check_branch
      %54 = sbr.rel (0) target = $region33
    $region32: #{tpu_custom_call.1} parent=1 // pred_region
      _
    $region33: #{tpu_custom_call.1} parent=1 // pred_fallthru
      _
    // Predicated region
    $region34: #{tpu_custom_call.1} parent=1 // pred_check
      _
    $region35: #{tpu_custom_call.1} parent=1 // pred_check_branch
      %56 = sbr.rel (0) target = $region37
    $region36: #{tpu_custom_call.1} parent=1 // pred_region
      _
    $region37: #{tpu_custom_call.1} parent=1 // pred_fallthru
      _
    // Predicated region
    $region38: #{tpu_custom_call.1} parent=1 // pred_check
      _
    $region39: #{tpu_custom_call.1} parent=1 // pred_check_branch
      %58 = sbr.rel (0) target = $region41
    $region40: #{tpu_custom_call.1} parent=1 // pred_region
      _
    $region41: #{tpu_custom_call.1} parent=1 // pred_fallthru
      _
    // Predicated region
    $region42: #{tpu_custom_call.1} parent=1 // pred_check
      _
    $region43: #{tpu_custom_call.1} parent=1 // pred_check_branch
      %60 = sbr.rel (0) target = $region45
    $region44: #{tpu_custom_call.1} parent=1 // pred_region
      _
    $region45: #{tpu_custom_call.1} parent=1 // pred_fallthru
      _
    // Predicated region
    $region46: #{tpu_custom_call.1} parent=1 // pred_check
      _
    $region47: #{tpu_custom_call.1} parent=1 // pred_check_branch
      %62 = sbr.rel (0) target = $region49
    $region48: #{tpu_custom_call.1} parent=1 // pred_region
      %63 = dma.done [#allocation4], 128
    $region49: #{tpu_custom_call.1} parent=1 // pred_fallthru
      _
    // Predicated region
    $region50: #{tpu_custom_call.1} parent=1 // pred_check
      _
    $region51: #{tpu_custom_call.1} parent=1 // pred_check_branch
      %65 = sbr.rel (0) target = $region53
    $region52: #{tpu_custom_call.1} parent=1 // pred_region
      %66 = dma.done [#allocation7], 16
    $region53: #{tpu_custom_call.1} parent=1 // pred_fallthru
      _
    %v68 = vld [vmem:[%s0] sm:$0xf]
    %v69 = vld [vmem:[%s0 + $0x4] sm:$0xf]
    %v70 = vld [vmem:[%s0 + $0x8] sm:$0xf]
    %v71 = vld [vmem:[%s0 + $0xc] sm:$0xf]
    %v72 = vld [vmem:[%s0 + $0x10] sm:$0xf]
    %v73 = vld [vmem:[%s0 + $0x14] sm:$0xf]
    %v74 = vld [vmem:[%s0 + $0x18] sm:$0xf]
    %v75 = vld [vmem:[%s0 + $0x1c] sm:$0xf]
    %v76 = vld [vmem:[%s0 + $0x20] sm:$0xf]
    %v77 = vld [vmem:[%s0 + $0x24] sm:$0xf]
    %v78 = vld [vmem:[%s0 + $0x28] sm:$0xf]
    %v79 = vld [vmem:[%s0 + $0x2c] sm:$0xf]
    %v80 = vld [vmem:[%s0 + $0x30] sm:$0xf]
    %v81 = vld [vmem:[%s0 + $0x34] sm:$0xf]
    %v82 = vld [vmem:[%s0 + $0x38] sm:$0xf]
    %v83 = vld [vmem:[%s0 + $0x3c] sm:$0xf]
    %v84 = vld [vmem:[#allocation3] sm:$0xf]
    %v85 = vld [vmem:[#allocation3 + $0x4] sm:$0x1]
    %v86 = vld [vmem:[%s2] sm:$0x1]
    %v88 = vlaneseq
    %v89 = vshrl.u32 %v88, 7
    %v90 = vsub.s32 0, %v89
    %v91 = vrot.slane %v86, %v90
    %v109 = vunpack.c.l.b16 %v68
    %v110 = vunpack.c.l.b16 %v69
    %v111 = vunpack.c.l.b16 %v70
    %v112 = vunpack.c.l.b16 %v71
    %v113 = vunpack.c.l.b16 %v72
    %v114 = vunpack.c.l.b16 %v73
    %v115 = vunpack.c.l.b16 %v74
    %v116 = vunpack.c.l.b16 %v75
    %v117 = vunpack.c.l.b16 %v76
    %v118 = vunpack.c.l.b16 %v77
    %v119 = vunpack.c.l.b16 %v78
    %v120 = vunpack.c.l.b16 %v79
    %v121 = vunpack.c.l.b16 %v80
    %v122 = vunpack.c.l.b16 %v81
    %v123 = vunpack.c.l.b16 %v82
    %v124 = vunpack.c.l.b16 %v83
    %v125 = vpack.c.b16 %v110, %v109
    %v126 = vpack.c.b16 %v112, %v111
    %v127 = vpack.c.b16 %v114, %v113
    %v128 = vpack.c.b16 %v116, %v115
    %v129 = vpack.c.b16 %v118, %v117
    %v130 = vpack.c.b16 %v120, %v119
    %v131 = vpack.c.b16 %v122, %v121
    %v132 = vpack.c.b16 %v124, %v123
    %v135 = vunpack.c.l.b16 %v84
    %v136 = vunpack.c.l.b16 %v85
    %v137 = vpack.c.b16 %v136, %v135
    %vm138 = vcmask 80896
    %v140 = vsel %vm138, %v125, 0
    %v143 = vsel %vm138, %v126, 0
    %v146 = vsel %vm138, %v127, 0
    %v149 = vsel %vm138, %v128, 0
    %v152 = vsel %vm138, %v129, 0
    %v155 = vsel %vm138, %v130, 0
    %v158 = vsel %vm138, %v131, 0
    %v161 = vsel %vm138, %v132, 0
    %vm163 = vcmask 1044480
    %v165 = vsel %vm163, %v137, 0
    %167 = vmatprep.subr.bf16.mxu0 0
    %168 = vmatpush1.bf16.msra.mxu0 %v165
    %169 = vmatprep.subr.bf16.mxu0 0
    %170 = vmatpush1.bf16.msra.mxu0 0
    %171 = vmatprep.subr.bf16.mxu0 0
    %172 = vmatpush1.bf16.msra.mxu0 0
    %173 = vmatprep.subr.bf16.mxu0 0
    %174 = vmatpush1.bf16.msra.mxu0 0
    %175 = vmatprep.subr.bf16.mxu0 0
    %176 = vmatpush1.bf16.msra.mxu0 0
    %177 = vmatprep.subr.bf16.mxu0 0
    %178 = vmatpush1.bf16.msra.mxu0 0
    %179 = vmatprep.subr.bf16.mxu0 0
    %180 = vmatpush1.bf16.msra.mxu0 0
    %181 = vmatprep.subr.bf16.mxu0 0
    %182 = vmatpush1.bf16.msra.mxu0 0
    %183 = vmatprep.subr.bf16.mxu0 0
    %184 = vmatpush1.bf16.msra.mxu0 0
    %185 = vmatprep.subr.bf16.mxu0 0
    %186 = vmatpush1.bf16.msra.mxu0 0
    %187 = vmatprep.subr.bf16.mxu0 0
    %188 = vmatpush1.bf16.msra.mxu0 0
    %189 = vmatprep.subr.bf16.mxu0 0
    %190 = vmatpush1.bf16.msra.mxu0 0
    %191 = vmatprep.subr.bf16.mxu0 0
    %192 = vmatpush1.bf16.msra.mxu0 0
    %193 = vmatprep.subr.bf16.mxu0 0
    %194 = vmatpush1.bf16.msra.mxu0 0
    %195 = vmatprep.subr.bf16.mxu0 0
    %196 = vmatpush1.bf16.msra.mxu0 0
    %197 = vmatprep.subr.bf16.mxu0 0
    %198 = vmatpush1.bf16.msra.mxu0 0
    %199 = vmatprep.mubr.bf16.mxu0 0
    %200 = vmatmul.mubr.bf16.gmra.mrb[0].mxu0 %v140
    %v201 = vpop.f32.mrb[0].mxu0
    %v202 = vadd.f32 %v91, %v201
    %v203 = vpop.f32.mrb[0].mxu0
    %v204 = vpop.f32.mrb[0].mxu0
    %v205 = vadd.f32 %v91, %v204
    %v206 = vpop.f32.mrb[0].mxu0
    %207 = vmatprep.mubr.bf16.mxu0 0
    %208 = vmatmul.mubr.bf16.gmra.mrb[0].mxu0 %v143
    %v209 = vpop.f32.mrb[0].mxu0
    %v210 = vadd.f32 %v91, %v209
    %v211 = vpop.f32.mrb[0].mxu0
    %v212 = vpop.f32.mrb[0].mxu0
    %v213 = vadd.f32 %v91, %v212
    %v214 = vpop.f32.mrb[0].mxu0
    %215 = vmatprep.mubr.bf16.mxu0 0
    %216 = vmatmul.mubr.bf16.gmra.mrb[0].mxu0 %v146
    %v217 = vpop.f32.mrb[0].mxu0
    %v218 = vadd.f32 %v91, %v217
    %v219 = vpop.f32.mrb[0].mxu0
    %v220 = vpop.f32.mrb[0].mxu0
    %v221 = vadd.f32 %v91, %v220
    %v222 = vpop.f32.mrb[0].mxu0
    %223 = vmatprep.mubr.bf16.mxu0 0
    %224 = vmatmul.mubr.bf16.gmra.mrb[0].mxu0 %v149
    %v225 = vpop.f32.mrb[0].mxu0
    %v226 = vadd.f32 %v91, %v225
    %v227 = vpop.f32.mrb[0].mxu0
    %v228 = vpop.f32.mrb[0].mxu0
    %v229 = vadd.f32 %v91, %v228
    %v230 = vpop.f32.mrb[0].mxu0
    %231 = vmatprep.mubr.bf16.mxu0 0
    %232 = vmatmul.mubr.bf16.gmra.mrb[0].mxu0 %v152
    %v233 = vpop.f32.mrb[0].mxu0
    %v234 = vadd.f32 %v91, %v233
    %v235 = vpop.f32.mrb[0].mxu0
    %v236 = vpop.f32.mrb[0].mxu0
    %v237 = vadd.f32 %v91, %v236
    %v238 = vpop.f32.mrb[0].mxu0
    %239 = vmatprep.mubr.bf16.mxu0 0
    %240 = vmatmul.mubr.bf16.gmra.mrb[0].mxu0 %v155
    %v241 = vpop.f32.mrb[0].mxu0
    %v242 = vadd.f32 %v91, %v241
    %v243 = vpop.f32.mrb[0].mxu0
    %v244 = vpop.f32.mrb[0].mxu0
    %v245 = vadd.f32 %v91, %v244
    %v246 = vpop.f32.mrb[0].mxu0
    %247 = vmatprep.mubr.bf16.mxu0 0
    %248 = vmatmul.mubr.bf16.gmra.mrb[0].mxu0 %v158
    %v249 = vpop.f32.mrb[0].mxu0
    %v250 = vadd.f32 %v91, %v249
    %v251 = vpop.f32.mrb[0].mxu0
    %v252 = vpop.f32.mrb[0].mxu0
    %v253 = vadd.f32 %v91, %v252
    %v254 = vpop.f32.mrb[0].mxu0
    %255 = vmatprep.mubr.bf16.mxu0 0
    %256 = vmatmul.mubr.bf16.gmra.mrb[0].mxu0 %v161
    %v257 = vpop.f32.mrb[0].mxu0
    %v258 = vadd.f32 %v91, %v257
    %v259 = vpop.f32.mrb[0].mxu0
    %v260 = vpop.f32.mrb[0].mxu0
    %v261 = vadd.f32 %v91, %v260
    %v262 = vpop.f32.mrb[0].mxu0
    %263 = vdwg.mxu0
    %v264 = vmax.f32 %v202, 0.0
    %v265 = vmax.f32 %v205, 0.0
    %v266 = vmax.f32 %v210, 0.0
    %v267 = vmax.f32 %v213, 0.0
    %v268 = vmax.f32 %v218, 0.0
    %v269 = vmax.f32 %v221, 0.0
    %v270 = vmax.f32 %v226, 0.0
    %v271 = vmax.f32 %v229, 0.0
    %v272 = vmax.f32 %v234, 0.0
    %v273 = vmax.f32 %v237, 0.0
    %v274 = vmax.f32 %v242, 0.0
    %v275 = vmax.f32 %v245, 0.0
    %v276 = vmax.f32 %v250, 0.0
    %v277 = vmax.f32 %v253, 0.0
    %v278 = vmax.f32 %v258, 0.0
    %v279 = vmax.f32 %v261, 0.0
    %v280 = vpack.c.bf16 %v265, %v264
    %v281 = vpack.c.bf16 %v267, %v266
    %v282 = vpack.c.bf16 %v269, %v268
    %v283 = vpack.c.bf16 %v271, %v270
    %v284 = vpack.c.bf16 %v273, %v272
    %v285 = vpack.c.bf16 %v275, %v274
    %v286 = vpack.c.bf16 %v277, %v276
    %v287 = vpack.c.bf16 %v279, %v278
    %v288 = vld [vmem:[%s3] sm:$0xf]
    %v289 = vld [vmem:[%s3 + $0x4] sm:$0xf]
    %v290 = vld [vmem:[%s3 + $0x8] sm:$0xf]
    %v291 = vld [vmem:[%s3 + $0xc] sm:$0xf]
    %v292 = vld [vmem:[%s3 + $0x10] sm:$0xf]
    %v293 = vld [vmem:[%s3 + $0x14] sm:$0xf]
    %v294 = vld [vmem:[%s3 + $0x18] sm:$0xf]
    %v295 = vld [vmem:[%s3 + $0x1c] sm:$0xf]
    %v296 = vld [vmem:[%s4] sm:$0x1]
    %v298 = vlaneseq
    %v299 = vshrl.u32 %v298, 7
    %v300 = vsub.s32 0, %v299
    %v301 = vrot.slane %v296, %v300
    %v311 = vunpack.c.l.b16 %v288
    %v312 = vunpack.c.l.b16 %v289
    %v313 = vunpack.c.l.b16 %v290
    %v314 = vunpack.c.l.b16 %v291
    %v315 = vunpack.c.l.b16 %v292
    %v316 = vunpack.c.l.b16 %v293
    %v317 = vunpack.c.l.b16 %v294
    %v318 = vunpack.c.l.b16 %v295
    %v319 = vpack.c.b16 %v312, %v311
    %v320 = vpack.c.b16 %v314, %v313
    %v321 = vpack.c.b16 %v316, %v315
    %v322 = vpack.c.b16 %v318, %v317
    %vm327 = vcmask 523264
    %v329 = vsel %vm327, %v280, 0
    %v332 = vsel %vm327, %v281, 0
    %v335 = vsel %vm327, %v282, 0
    %v338 = vsel %vm327, %v283, 0
    %v341 = vsel %vm327, %v284, 0
    %v344 = vsel %vm327, %v285, 0
    %v347 = vsel %vm327, %v286, 0
    %v350 = vsel %vm327, %v287, 0
    %352 = vmatprep.subr.bf16.mxu0 0
    %353 = vmatpush1.bf16.msra.mxu0 %v319
    %354 = vmatprep.subr.bf16.mxu0 0
    %355 = vmatpush1.bf16.msra.mxu0 %v320
    %356 = vmatprep.subr.bf16.mxu0 0
    %357 = vmatpush1.bf16.msra.mxu0 %v321
    %358 = vmatprep.subr.bf16.mxu0 0
    %359 = vmatpush1.bf16.msra.mxu0 %v322
    %360 = vmatprep.subr.bf16.mxu0 0
    %361 = vmatpush1.bf16.msra.mxu0 0
    %362 = vmatprep.subr.bf16.mxu0 0
    %363 = vmatpush1.bf16.msra.mxu0 0
    %364 = vmatprep.subr.bf16.mxu0 0
    %365 = vmatpush1.bf16.msra.mxu0 0
    %366 = vmatprep.subr.bf16.mxu0 0
    %367 = vmatpush1.bf16.msra.mxu0 0
    %368 = vmatprep.subr.bf16.mxu0 0
    %369 = vmatpush1.bf16.msra.mxu0 0
    %370 = vmatprep.subr.bf16.mxu0 0
    %371 = vmatpush1.bf16.msra.mxu0 0
    %372 = vmatprep.subr.bf16.mxu0 0
    %373 = vmatpush1.bf16.msra.mxu0 0
    %374 = vmatprep.subr.bf16.mxu0 0
    %375 = vmatpush1.bf16.msra.mxu0 0
    %376 = vmatprep.subr.bf16.mxu0 0
    %377 = vmatpush1.bf16.msra.mxu0 0
    %378 = vmatprep.subr.bf16.mxu0 0
    %379 = vmatpush1.bf16.msra.mxu0 0
    %380 = vmatprep.subr.bf16.mxu0 0
    %381 = vmatpush1.bf16.msra.mxu0 0
    %382 = vmatprep.subr.bf16.mxu0 0
    %383 = vmatpush1.bf16.msra.mxu0 0
    %384 = vmatprep.mubr.bf16.mxu0 0
    %385 = vmatmul.mubr.bf16.gmra.mrb[0].mxu0 %v329
    %v386 = vpop.f32.mrb[0].mxu0
    %v387 = vadd.f32 %v301, %v386
    %v388 = vpop.f32.mrb[0].mxu0
    %v389 = vpop.f32.mrb[0].mxu0
    %v390 = vadd.f32 %v301, %v389
    %v391 = vpop.f32.mrb[0].mxu0
    %392 = vmatprep.mubr.bf16.mxu0 0
    %393 = vmatmul.mubr.bf16.gmra.mrb[0].mxu0 %v332
    %v394 = vpop.f32.mrb[0].mxu0
    %v395 = vadd.f32 %v301, %v394
    %v396 = vpop.f32.mrb[0].mxu0
    %v397 = vpop.f32.mrb[0].mxu0
    %v398 = vadd.f32 %v301, %v397
    %v399 = vpop.f32.mrb[0].mxu0
    %400 = vmatprep.mubr.bf16.mxu0 0
    %401 = vmatmul.mubr.bf16.gmra.mrb[0].mxu0 %v335
    %v402 = vpop.f32.mrb[0].mxu0
    %v403 = vadd.f32 %v301, %v402
    %v404 = vpop.f32.mrb[0].mxu0
    %v405 = vpop.f32.mrb[0].mxu0
    %v406 = vadd.f32 %v301, %v405
    %v407 = vpop.f32.mrb[0].mxu0
    %408 = vmatprep.mubr.bf16.mxu0 0
    %409 = vmatmul.mubr.bf16.gmra.mrb[0].mxu0 %v338
    %v410 = vpop.f32.mrb[0].mxu0
    %v411 = vadd.f32 %v301, %v410
    %v412 = vpop.f32.mrb[0].mxu0
    %v413 = vpop.f32.mrb[0].mxu0
    %v414 = vadd.f32 %v301, %v413
    %v415 = vpop.f32.mrb[0].mxu0
    %416 = vmatprep.mubr.bf16.mxu0 0
    %417 = vmatmul.mubr.bf16.gmra.mrb[0].mxu0 %v341
    %v418 = vpop.f32.mrb[0].mxu0
    %v419 = vadd.f32 %v301, %v418
    %v420 = vpop.f32.mrb[0].mxu0
    %v421 = vpop.f32.mrb[0].mxu0
    %v422 = vadd.f32 %v301, %v421
    %v423 = vpop.f32.mrb[0].mxu0
    %424 = vmatprep.mubr.bf16.mxu0 0
    %425 = vmatmul.mubr.bf16.gmra.mrb[0].mxu0 %v344
    %v426 = vpop.f32.mrb[0].mxu0
    %v427 = vadd.f32 %v301, %v426
    %v428 = vpop.f32.mrb[0].mxu0
    %v429 = vpop.f32.mrb[0].mxu0
    %v430 = vadd.f32 %v301, %v429
    %v431 = vpop.f32.mrb[0].mxu0
    %432 = vmatprep.mubr.bf16.mxu0 0
    %433 = vmatmul.mubr.bf16.gmra.mrb[0].mxu0 %v347
    %v434 = vpop.f32.mrb[0].mxu0
    %v435 = vadd.f32 %v301, %v434
    %v436 = vpop.f32.mrb[0].mxu0
    %v437 = vpop.f32.mrb[0].mxu0
    %v438 = vadd.f32 %v301, %v437
    %v439 = vpop.f32.mrb[0].mxu0
    %440 = vmatprep.mubr.bf16.mxu0 0
    %441 = vmatmul.mubr.bf16.gmra.mrb[0].mxu0 %v350
    %v442 = vpop.f32.mrb[0].mxu0
    %v443 = vadd.f32 %v301, %v442
    %v444 = vpop.f32.mrb[0].mxu0
    %v445 = vpop.f32.mrb[0].mxu0
    %v446 = vadd.f32 %v301, %v445
    %v447 = vpop.f32.mrb[0].mxu0
    %448 = vdwg.mxu0
    %v449 = vmax.f32 %v387, 0.0
    %v450 = vmax.f32 %v390, 0.0
    %v451 = vmax.f32 %v395, 0.0
    %v452 = vmax.f32 %v398, 0.0
    %v453 = vmax.f32 %v403, 0.0
    %v454 = vmax.f32 %v406, 0.0
    %v455 = vmax.f32 %v411, 0.0
    %v456 = vmax.f32 %v414, 0.0
    %v457 = vmax.f32 %v419, 0.0
    %v458 = vmax.f32 %v422, 0.0
    %v459 = vmax.f32 %v427, 0.0
    %v460 = vmax.f32 %v430, 0.0
    %v461 = vmax.f32 %v435, 0.0
    %v462 = vmax.f32 %v438, 0.0
    %v463 = vmax.f32 %v443, 0.0
    %v464 = vmax.f32 %v446, 0.0
    %v465 = vpack.c.bf16 %v450, %v449
    %v466 = vpack.c.bf16 %v452, %v451
    %v467 = vpack.c.bf16 %v454, %v453
    %v468 = vpack.c.bf16 %v456, %v455
    %v469 = vpack.c.bf16 %v458, %v457
    %v470 = vpack.c.bf16 %v460, %v459
    %v471 = vpack.c.bf16 %v462, %v461
    %v472 = vpack.c.bf16 %v464, %v463
    %v473 = vld [vmem:[%s5] sm:$0xf]
    %v474 = vld [vmem:[%s5 + $0x4] sm:$0xf]
    %v475 = vld [vmem:[%s5 + $0x8] sm:$0xf]
    %v476 = vld [vmem:[%s5 + $0xc] sm:$0xf]
    %v477 = vld [vmem:[%s5 + $0x10] sm:$0xf]
    %v478 = vld [vmem:[%s5 + $0x14] sm:$0xf]
    %v479 = vld [vmem:[%s5 + $0x18] sm:$0xf]
    %v480 = vld [vmem:[%s5 + $0x1c] sm:$0xf]
    %v481 = vld [vmem:[#allocation6] sm:$0x1]
    %v483 = vlaneseq
    %v484 = vshrl.u32 %v483, 7
    %v485 = vsub.s32 0, %v484
    %v486 = vrot.slane %v481, %v485
    %v496 = vunpack.c.l.b16 %v473
    %v497 = vunpack.c.l.b16 %v474
    %v498 = vunpack.c.l.b16 %v475
    %v499 = vunpack.c.l.b16 %v476
    %v500 = vunpack.c.l.b16 %v477
    %v501 = vunpack.c.l.b16 %v478
    %v502 = vunpack.c.l.b16 %v479
    %v503 = vunpack.c.l.b16 %v480
    %v504 = vpack.c.b16 %v497, %v496
    %v505 = vpack.c.b16 %v499, %v498
    %v506 = vpack.c.b16 %v501, %v500
    %v507 = vpack.c.b16 %v503, %v502
    %v513 = vsel %vm327, %v465, 0
    %v516 = vsel %vm327, %v466, 0
    %v519 = vsel %vm327, %v467, 0
    %v522 = vsel %vm327, %v468, 0
    %v525 = vsel %vm327, %v469, 0
    %v528 = vsel %vm327, %v470, 0
    %v531 = vsel %vm327, %v471, 0
    %v534 = vsel %vm327, %v472, 0
    %536 = vmatprep.subr.bf16.mxu0 0
    %537 = vmatpush1.bf16.msra.mxu0 %v504
    %538 = vmatprep.subr.bf16.mxu0 0
    %539 = vmatpush1.bf16.msra.mxu0 %v505
    %540 = vmatprep.subr.bf16.mxu0 0
    %541 = vmatpush1.bf16.msra.mxu0 %v506
    %542 = vmatprep.subr.bf16.mxu0 0
    %543 = vmatpush1.bf16.msra.mxu0 %v507
    %544 = vmatprep.subr.bf16.mxu0 0
    %545 = vmatpush1.bf16.msra.mxu0 0
    %546 = vmatprep.subr.bf16.mxu0 0
    %547 = vmatpush1.bf16.msra.mxu0 0
    %548 = vmatprep.subr.bf16.mxu0 0
    %549 = vmatpush1.bf16.msra.mxu0 0
    %550 = vmatprep.subr.bf16.mxu0 0
    %551 = vmatpush1.bf16.msra.mxu0 0
    %552 = vmatprep.subr.bf16.mxu0 0
    %553 = vmatpush1.bf16.msra.mxu0 0
    %554 = vmatprep.subr.bf16.mxu0 0
    %555 = vmatpush1.bf16.msra.mxu0 0
    %556 = vmatprep.subr.bf16.mxu0 0
    %557 = vmatpush1.bf16.msra.mxu0 0
    %558 = vmatprep.subr.bf16.mxu0 0
    %559 = vmatpush1.bf16.msra.mxu0 0
    %560 = vmatprep.subr.bf16.mxu0 0
    %561 = vmatpush1.bf16.msra.mxu0 0
    %562 = vmatprep.subr.bf16.mxu0 0
    %563 = vmatpush1.bf16.msra.mxu0 0
    %564 = vmatprep.subr.bf16.mxu0 0
    %565 = vmatpush1.bf16.msra.mxu0 0
    %566 = vmatprep.subr.bf16.mxu0 0
    %567 = vmatpush1.bf16.msra.mxu0 0
    %568 = vmatprep.mubr.bf16.mxu0 0
    %569 = vmatmul.mubr.bf16.gmra.mrb[0].mxu0 %v513
    %v570 = vpop.f32.mrb[0].mxu0
    %v571 = vadd.f32 %v486, %v570
    %v572 = vpop.f32.mrb[0].mxu0
    %v573 = vpop.f32.mrb[0].mxu0
    %v574 = vadd.f32 %v486, %v573
    %v575 = vpop.f32.mrb[0].mxu0
    %576 = vmatprep.mubr.bf16.mxu0 0
    %577 = vmatmul.mubr.bf16.gmra.mrb[0].mxu0 %v516
    %v578 = vpop.f32.mrb[0].mxu0
    %v579 = vadd.f32 %v486, %v578
    %v580 = vpop.f32.mrb[0].mxu0
    %v581 = vpop.f32.mrb[0].mxu0
    %v582 = vadd.f32 %v486, %v581
    %v583 = vpop.f32.mrb[0].mxu0
    %584 = vmatprep.mubr.bf16.mxu0 0
    %585 = vmatmul.mubr.bf16.gmra.mrb[0].mxu0 %v519
    %v586 = vpop.f32.mrb[0].mxu0
    %v587 = vadd.f32 %v486, %v586
    %v588 = vpop.f32.mrb[0].mxu0
    %v589 = vpop.f32.mrb[0].mxu0
    %v590 = vadd.f32 %v486, %v589
    %v591 = vpop.f32.mrb[0].mxu0
    %592 = vmatprep.mubr.bf16.mxu0 0
    %593 = vmatmul.mubr.bf16.gmra.mrb[0].mxu0 %v522
    %v594 = vpop.f32.mrb[0].mxu0
    %v595 = vadd.f32 %v486, %v594
    %v596 = vpop.f32.mrb[0].mxu0
    %v597 = vpop.f32.mrb[0].mxu0
    %v598 = vadd.f32 %v486, %v597
    %v599 = vpop.f32.mrb[0].mxu0
    %600 = vmatprep.mubr.bf16.mxu0 0
    %601 = vmatmul.mubr.bf16.gmra.mrb[0].mxu0 %v525
    %v602 = vpop.f32.mrb[0].mxu0
    %v603 = vadd.f32 %v486, %v602
    %v604 = vpop.f32.mrb[0].mxu0
    %v605 = vpop.f32.mrb[0].mxu0
    %v606 = vadd.f32 %v486, %v605
    %v607 = vpop.f32.mrb[0].mxu0
    %608 = vmatprep.mubr.bf16.mxu0 0
    %609 = vmatmul.mubr.bf16.gmra.mrb[0].mxu0 %v528
    %v610 = vpop.f32.mrb[0].mxu0
    %v611 = vadd.f32 %v486, %v610
    %v612 = vpop.f32.mrb[0].mxu0
    %v613 = vpop.f32.mrb[0].mxu0
    %v614 = vadd.f32 %v486, %v613
    %v615 = vpop.f32.mrb[0].mxu0
    %616 = vmatprep.mubr.bf16.mxu0 0
    %617 = vmatmul.mubr.bf16.gmra.mrb[0].mxu0 %v531
    %v618 = vpop.f32.mrb[0].mxu0
    %v619 = vadd.f32 %v486, %v618
    %v620 = vpop.f32.mrb[0].mxu0
    %v621 = vpop.f32.mrb[0].mxu0
    %v622 = vadd.f32 %v486, %v621
    %v623 = vpop.f32.mrb[0].mxu0
    %624 = vmatprep.mubr.bf16.mxu0 0
    %625 = vmatmul.mubr.bf16.gmra.mrb[0].mxu0 %v534
    %v626 = vpop.f32.mrb[0].mxu0
    %v627 = vadd.f32 %v486, %v626
    %v628 = vpop.f32.mrb[0].mxu0
    %v629 = vpop.f32.mrb[0].mxu0
    %v630 = vadd.f32 %v486, %v629
    %v631 = vpop.f32.mrb[0].mxu0
    %632 = vdwg.mxu0
    %v633 = vmax.f32 %v571, 0.0
    %v634 = vmax.f32 %v574, 0.0
    %v635 = vmax.f32 %v579, 0.0
    %v636 = vmax.f32 %v582, 0.0
    %v637 = vmax.f32 %v587, 0.0
    %v638 = vmax.f32 %v590, 0.0
    %v639 = vmax.f32 %v595, 0.0
    %v640 = vmax.f32 %v598, 0.0
    %v641 = vmax.f32 %v603, 0.0
    %v642 = vmax.f32 %v606, 0.0
    %v643 = vmax.f32 %v611, 0.0
    %v644 = vmax.f32 %v614, 0.0
    %v645 = vmax.f32 %v619, 0.0
    %v646 = vmax.f32 %v622, 0.0
    %v647 = vmax.f32 %v627, 0.0
    %v648 = vmax.f32 %v630, 0.0
    %v649 = vpack.c.bf16 %v634, %v633
    %v650 = vpack.c.bf16 %v636, %v635
    %v651 = vpack.c.bf16 %v638, %v637
    %v652 = vpack.c.bf16 %v640, %v639
    %v653 = vpack.c.bf16 %v642, %v641
    %v654 = vpack.c.bf16 %v644, %v643
    %v655 = vpack.c.bf16 %v646, %v645
    %v656 = vpack.c.bf16 %v648, %v647
    %v657 = vld [vmem:[%s7] sm:$0xf]
    %v658 = vld [vmem:[%s7 + $0x4] sm:$0xf]
    %v659 = vld [vmem:[%s7 + $0x8] sm:$0xf]
    %v660 = vld [vmem:[%s7 + $0xc] sm:$0xf]
    %v661 = vld [vmem:[%s7 + $0x10] sm:$0xf]
    %v662 = vld [vmem:[%s7 + $0x14] sm:$0xf]
    %v663 = vld [vmem:[%s7 + $0x18] sm:$0xf]
    %v664 = vld [vmem:[%s7 + $0x1c] sm:$0xf]
    %v665 = vld [vmem:[%s8] sm:$0x1]
    %v667 = vlaneseq
    %v668 = vshrl.u32 %v667, 7
    %v669 = vsub.s32 0, %v668
    %v670 = vrot.slane %v665, %v669
    %v680 = vunpack.c.l.b16 %v657
    %v681 = vunpack.c.l.b16 %v658
    %v682 = vunpack.c.l.b16 %v659
    %v683 = vunpack.c.l.b16 %v660
    %v684 = vunpack.c.l.b16 %v661
    %v685 = vunpack.c.l.b16 %v662
    %v686 = vunpack.c.l.b16 %v663
    %v687 = vunpack.c.l.b16 %v664
    %v688 = vpack.c.b16 %v681, %v680
    %v689 = vpack.c.b16 %v683, %v682
    %v690 = vpack.c.b16 %v685, %v684
    %v691 = vpack.c.b16 %v687, %v686
    %v697 = vsel %vm327, %v649, 0
    %v700 = vsel %vm327, %v650, 0
    %v703 = vsel %vm327, %v651, 0
    %v706 = vsel %vm327, %v652, 0
    %v709 = vsel %vm327, %v653, 0
    %v712 = vsel %vm327, %v654, 0
    %v715 = vsel %vm327, %v655, 0
    %v718 = vsel %vm327, %v656, 0
    %720 = vmatprep.subr.bf16.mxu0 0
    %721 = vmatpush1.bf16.msra.mxu0 %v688
    %722 = vmatprep.subr.bf16.mxu0 0
    %723 = vmatpush1.bf16.msra.mxu0 %v689
    %724 = vmatprep.subr.bf16.mxu0 0
    %725 = vmatpush1.bf16.msra.mxu0 %v690
    %726 = vmatprep.subr.bf16.mxu0 0
    %727 = vmatpush1.bf16.msra.mxu0 %v691
    %728 = vmatprep.subr.bf16.mxu0 0
    %729 = vmatpush1.bf16.msra.mxu0 0
    %730 = vmatprep.subr.bf16.mxu0 0
    %731 = vmatpush1.bf16.msra.mxu0 0
    %732 = vmatprep.subr.bf16.mxu0 0
    %733 = vmatpush1.bf16.msra.mxu0 0
    %734 = vmatprep.subr.bf16.mxu0 0
    %735 = vmatpush1.bf16.msra.mxu0 0
    %736 = vmatprep.subr.bf16.mxu0 0
    %737 = vmatpush1.bf16.msra.mxu0 0
    %738 = vmatprep.subr.bf16.mxu0 0
    %739 = vmatpush1.bf16.msra.mxu0 0
    %740 = vmatprep.subr.bf16.mxu0 0
    %741 = vmatpush1.bf16.msra.mxu0 0
    %742 = vmatprep.subr.bf16.mxu0 0
    %743 = vmatpush1.bf16.msra.mxu0 0
    %744 = vmatprep.subr.bf16.mxu0 0
    %745 = vmatpush1.bf16.msra.mxu0 0
    %746 = vmatprep.subr.bf16.mxu0 0
    %747 = vmatpush1.bf16.msra.mxu0 0
    %748 = vmatprep.subr.bf16.mxu0 0
    %749 = vmatpush1.bf16.msra.mxu0 0
    %750 = vmatprep.subr.bf16.mxu0 0
    %751 = vmatpush1.bf16.msra.mxu0 0
    %752 = vmatprep.mubr.bf16.mxu0 0
    %753 = vmatmul.mubr.bf16.gmra.mrb[0].mxu0 %v697
    %v754 = vpop.f32.mrb[0].mxu0
    %v755 = vadd.f32 %v670, %v754
    %v756 = vpop.f32.mrb[0].mxu0
    %v757 = vpop.f32.mrb[0].mxu0
    %v758 = vadd.f32 %v670, %v757
    %v759 = vpop.f32.mrb[0].mxu0
    %760 = vmatprep.mubr.bf16.mxu0 0
    %761 = vmatmul.mubr.bf16.gmra.mrb[0].mxu0 %v700
    %v762 = vpop.f32.mrb[0].mxu0
    %v763 = vadd.f32 %v670, %v762
    %v764 = vpop.f32.mrb[0].mxu0
    %v765 = vpop.f32.mrb[0].mxu0
    %v766 = vadd.f32 %v670, %v765
    %v767 = vpop.f32.mrb[0].mxu0
    %768 = vmatprep.mubr.bf16.mxu0 0
    %769 = vmatmul.mubr.bf16.gmra.mrb[0].mxu0 %v703
    %v770 = vpop.f32.mrb[0].mxu0
    %v771 = vadd.f32 %v670, %v770
    %v772 = vpop.f32.mrb[0].mxu0
    %v773 = vpop.f32.mrb[0].mxu0
    %v774 = vadd.f32 %v670, %v773
    %v775 = vpop.f32.mrb[0].mxu0
    %776 = vmatprep.mubr.bf16.mxu0 0
    %777 = vmatmul.mubr.bf16.gmra.mrb[0].mxu0 %v706
    %v778 = vpop.f32.mrb[0].mxu0
    %v779 = vadd.f32 %v670, %v778
    %v780 = vpop.f32.mrb[0].mxu0
    %v781 = vpop.f32.mrb[0].mxu0
    %v782 = vadd.f32 %v670, %v781
    %v783 = vpop.f32.mrb[0].mxu0
    %784 = vmatprep.mubr.bf16.mxu0 0
    %785 = vmatmul.mubr.bf16.gmra.mrb[0].mxu0 %v709
    %v786 = vpop.f32.mrb[0].mxu0
    %v787 = vadd.f32 %v670, %v786
    %v788 = vpop.f32.mrb[0].mxu0
    %v789 = vpop.f32.mrb[0].mxu0
    %v790 = vadd.f32 %v670, %v789
    %v791 = vpop.f32.mrb[0].mxu0
    %792 = vmatprep.mubr.bf16.mxu0 0
    %793 = vmatmul.mubr.bf16.gmra.mrb[0].mxu0 %v712
    %v794 = vpop.f32.mrb[0].mxu0
    %v795 = vadd.f32 %v670, %v794
    %v796 = vpop.f32.mrb[0].mxu0
    %v797 = vpop.f32.mrb[0].mxu0
    %v798 = vadd.f32 %v670, %v797
    %v799 = vpop.f32.mrb[0].mxu0
    %800 = vmatprep.mubr.bf16.mxu0 0
    %801 = vmatmul.mubr.bf16.gmra.mrb[0].mxu0 %v715
    %v802 = vpop.f32.mrb[0].mxu0
    %v803 = vadd.f32 %v670, %v802
    %v804 = vpop.f32.mrb[0].mxu0
    %v805 = vpop.f32.mrb[0].mxu0
    %v806 = vadd.f32 %v670, %v805
    %v807 = vpop.f32.mrb[0].mxu0
    %808 = vmatprep.mubr.bf16.mxu0 0
    %809 = vmatmul.mubr.bf16.gmra.mrb[0].mxu0 %v718
    %v810 = vpop.f32.mrb[0].mxu0
    %v811 = vadd.f32 %v670, %v810
    %v812 = vpop.f32.mrb[0].mxu0
    %v813 = vpop.f32.mrb[0].mxu0
    %v814 = vadd.f32 %v670, %v813
    %v815 = vpop.f32.mrb[0].mxu0
    %816 = vdwg.mxu0
    %v817 = vmax.f32 %v755, 0.0
    %v818 = vmax.f32 %v758, 0.0
    %v819 = vmax.f32 %v763, 0.0
    %v820 = vmax.f32 %v766, 0.0
    %v821 = vmax.f32 %v771, 0.0
    %v822 = vmax.f32 %v774, 0.0
    %v823 = vmax.f32 %v779, 0.0
    %v824 = vmax.f32 %v782, 0.0
    %v825 = vmax.f32 %v787, 0.0
    %v826 = vmax.f32 %v790, 0.0
    %v827 = vmax.f32 %v795, 0.0
    %v828 = vmax.f32 %v798, 0.0
    %v829 = vmax.f32 %v803, 0.0
    %v830 = vmax.f32 %v806, 0.0
    %v831 = vmax.f32 %v811, 0.0
    %v832 = vmax.f32 %v814, 0.0
    %v833 = vpack.c.bf16 %v818, %v817
    %v834 = vpack.c.bf16 %v820, %v819
    %v835 = vpack.c.bf16 %v822, %v821
    %v836 = vpack.c.bf16 %v824, %v823
    %v837 = vpack.c.bf16 %v826, %v825
    %v838 = vpack.c.bf16 %v828, %v827
    %v839 = vpack.c.bf16 %v830, %v829
    %v840 = vpack.c.bf16 %v832, %v831
    %v841 = vld [vmem:[%s9] sm:$0x1]
    %v842 = vld [vmem:[#allocation2] sm:$0x1]
    %844 = vset.pattern.permute.xlu0 0
    %845 = vperm.xlu0 %844, %v842
    %v846 = vpop.permute.xlu0 %845
    %v848 = vlaneseq
    %v849 = vshrl.u32 %v848, 7
    %v850 = vsub.s32 0, %v849
    %v851 = vrot.slane %v846, %v850
    %v853 = vsel %vm327, %v841, 0
    %v856 = vsel %vm327, %v833, 0
    %v859 = vsel %vm327, %v834, 0
    %v862 = vsel %vm327, %v835, 0
    %v865 = vsel %vm327, %v836, 0
    %v868 = vsel %vm327, %v837, 0
    %v871 = vsel %vm327, %v838, 0
    %v874 = vsel %vm327, %v839, 0
    %v877 = vsel %vm327, %v840, 0
    %879 = vmatprep.subr.bf16.mxu0 0
    %880 = vmatpush1.bf16.xpose.msra.mxu0 %v856
    %881 = vmatprep.subr.bf16.mxu0 0
    %882 = vmatpush1.bf16.xpose.msra.mxu0 %v859
    %883 = vmatprep.subr.bf16.mxu0 0
    %884 = vmatpush1.bf16.xpose.msra.mxu0 %v862
    %885 = vmatprep.subr.bf16.mxu0 0
    %886 = vmatpush1.bf16.xpose.msra.mxu0 %v865
    %887 = vmatprep.subr.bf16.mxu0 0
    %888 = vmatpush1.bf16.xpose.msra.mxu0 %v868
    %889 = vmatprep.subr.bf16.mxu0 0
    %890 = vmatpush1.bf16.xpose.msra.mxu0 %v871
    %891 = vmatprep.subr.bf16.mxu0 0
    %892 = vmatpush1.bf16.xpose.msra.mxu0 %v874
    %893 = vmatprep.subr.bf16.mxu0 0
    %894 = vmatpush1.bf16.xpose.msra.mxu0 %v877
    %895 = vmatprep.subr.bf16.mxu0 0
    %896 = vmatpush1.bf16.xpose.msra.mxu0 0
    %897 = vmatprep.subr.bf16.mxu0 0
    %898 = vmatpush1.bf16.xpose.msra.mxu0 0
    %899 = vmatprep.subr.bf16.mxu0 0
    %900 = vmatpush1.bf16.xpose.msra.mxu0 0
    %901 = vmatprep.subr.bf16.mxu0 0
    %902 = vmatpush1.bf16.xpose.msra.mxu0 0
    %903 = vmatprep.subr.bf16.mxu0 0
    %904 = vmatpush1.bf16.xpose.msra.mxu0 0
    %905 = vmatprep.subr.bf16.mxu0 0
    %906 = vmatpush1.bf16.xpose.msra.mxu0 0
    %907 = vmatprep.subr.bf16.mxu0 0
    %908 = vmatpush1.bf16.xpose.msra.mxu0 0
    %909 = vmatprep.subr.bf16.mxu0 0
    %910 = vmatpush1.bf16.xpose.msra.mxu0 0
    %911 = vmatprep.mubr.bf16.mxu0 0
    %912 = vmatmul.mubr.bf16.gmra.mrb[0].mxu0 %v853
    %v913 = vpop.f32.mrb[0].mxu0
    %v914 = vadd.f32 %v851, %v913
    %v915 = vpop.f32.mrb[0].mxu0
    %v916 = vpop.f32.mrb[0].mxu0
    %v917 = vpop.f32.mrb[0].mxu0
    %918 = vdwg.mxu0
    %919 = vst [vmem:[#allocation8] sm:$0x1] %v914
    // Predicated region
    $region54: #{tpu_custom_call.1} parent=1 // pred_check
      _
    $region55: #{tpu_custom_call.1} parent=1 // pred_check_branch
      %921 = sbr.rel (0) target = $region57
    $region56: #{tpu_custom_call.1} parent=1 // pred_region
      %s923 = ssub.s32 16, 16
      %924 = vsyncadd [#allocation5], %s923
      %s926 = sshll.u32 [#allocation8], 4
      %s927 = int_to_ptr.vmem [resolvable:$true] %s926
      %929 = dma.vmem_to_hbm [thread:$0]  %s927, 16, %s11, [#allocation5]
    $region57: #{tpu_custom_call.1} parent=1 // pred_fallthru
      _
    // Predicated region
    $region58: #{tpu_custom_call.1} parent=1 // pred_check
      _
    $region59: #{tpu_custom_call.1} parent=1 // pred_check_branch
      %931 = sbr.rel (0) target = $region61
    $region60: #{tpu_custom_call.1} parent=1 // pred_region
      %932 = dma.done [#allocation5], 16
    $region61: #{tpu_custom_call.1} parent=1 // pred_fallthru
      _
    %933 = vsyncpa [#allocation4], 1
    %934 = vsyncpa [#allocation7], 1
    %935 = vsyncpa [#allocation5], 1

</llo_original>
